<compile_context>
chip_gen: v7x
topology: tpu7x:2x2x1
jax: 0.10.0
libtpu: 0.0.40
codegen_flags: <defaults>
</compile_context>

<pallas_src>
import functools

import jax
import jax.numpy as jnp
from jax.experimental import pallas as pl
from jax.experimental.pallas import tpu as pltpu

_LN_EPS = 1e-5
_MSG_EPS = 1e-7
_LANE = 128
_FULL_BLOCK_MAX = 512      # node counts <= this use single full-extent blocks

# Flip on v7x (2 TensorCores / chip) to shard the node-parallel grid axes
# across cores.  Left off by default so the same script runs on every
# generation (v5e/v6e have a single TensorCore).
_USE_CORE_PARALLEL = False


def _par():
    return pltpu.CORE_PARALLEL if _USE_CORE_PARALLEL else "parallel"


def _cparams(sems, vmem_limit=None):
    return pltpu.CompilerParams(dimension_semantics=tuple(sems),
                                vmem_limit_bytes=vmem_limit)


def _vmem_budget_bytes():
    """Per-generation scoped-VMEM budget (review: don't hard-code 32 MiB)."""
    try:
        info = pltpu.get_tpu_info()
        cap = int(getattr(info, "vmem_capacity_bytes", 0))
    except Exception:
        cap = 0
    if cap >= 128 * 1024 * 1024:      # v5e / v6e: 128 MiB physical
        return 96 * 1024 * 1024
    if cap > 0:                       # v7x-class: 64 MiB physical
        return 44 * 1024 * 1024
    return 40 * 1024 * 1024           # unknown / interpret: conservative


def _round_up(x, m):
    return (x + m - 1) // m * m


def _pick_tile(n, cap, align):
    """Largest multiple of `align` <= cap dividing n, else n (full block).

    Callers pad the node axis to a multiple of 128 whenever n exceeds
    _FULL_BLOCK_MAX, so the full-block fallback only triggers for small n.
    """
    if n <= cap:
        return n
    t = (cap // align) * align
    while t >= align:
        if n % t == 0:
            return t
        t -= align
    return n


def _pad2(a, rows, cols):
    return jnp.pad(a, ((0, rows - a.shape[0]), (0, cols - a.shape[1])))


def _pad1(a, cols):
    return jnp.pad(a, ((0, cols - a.shape[0]),))


def _masked_ln_relu(x, g, b, fmask, h_real, eps):
    # LayerNorm over the *real* feature columns only (padded cols are zero and
    # excluded from the statistics), followed by ReLU.  gamma/beta are
    # zero-padded so padded output columns stay exactly zero.
    xm = x * fmask
    mu = jnp.sum(xm, axis=-1, keepdims=True) * (1.0 / h_real)
    xc = (x - mu) * fmask
    var = jnp.sum(xc * xc, axis=-1, keepdims=True) * (1.0 / h_real)
    y = xc * jax.lax.rsqrt(var + eps) * g + b
    return jnp.maximum(y, 0.0)


# ----------------------------- Pallas kernels ------------------------------

def _linear_kernel(x_ref, w_ref, b_ref, o_ref):
    o_ref[...] = (
        jnp.dot(x_ref[...], w_ref[...], preferred_element_type=jnp.float32)
        + b_ref[...]
    )


def linear(x, w, b, *, tile_n=256, vmem_limit=None):
    n, k = x.shape
    m = w.shape[1]
    tn = _pick_tile(n, tile_n, 8)
    return pl.pallas_call(
        _linear_kernel,
        out_shape=jax.ShapeDtypeStruct((n, m), jnp.float32),
        grid=(n // tn,),
        in_specs=[
            pl.BlockSpec((tn, k), lambda i: (i, 0)),
            pl.BlockSpec((k, m), lambda i: (0, 0)),
            pl.BlockSpec((1, m), lambda i: (0, 0)),
        ],
        out_specs=pl.BlockSpec((tn, m), lambda i: (i, 0)),
        compiler_params=_cparams((_par(),), vmem_limit),
    )(x, w, b.reshape(1, m))


def _prep_kernel(h_ref, g_ref, b_ref, fm_ref, xp_ref, tmax_ref, *,
                 t, h_real, apply_ln):
    # Fused (LayerNorm -> ReLU -> dropout[eval]=id) + GENConv msg transform.
    # Emits a per-node-tile max of t*msg (broadcast to an (8,H) lane-dense
    # block) so the node axis stays fully parallel; the global softmax shift
    # is a tiny reduction outside the kernel.
    x = h_ref[...]
    if apply_ln:
        x = _masked_ln_relu(x, g_ref[...], b_ref[...], fm_ref[...],
                            h_real, _LN_EPS)
    xp_ref[...] = x
    msg = jnp.maximum(x, 0.0) + _MSG_EPS
    local = jnp.max(jnp.float32(t) * msg, axis=0, keepdims=True)
    tmax_ref[...] = jnp.broadcast_to(local, tmax_ref.shape)


def prep(h, g, b, fmask, *, t, h_real, apply_ln, tile_n=512, vmem_limit=None):
    n, hp = h.shape
    tn = _pick_tile(n, tile_n, 8)
    nt = n // tn
    g = g.reshape(1, hp)
    b = b.reshape(1, hp)
    fmask = fmask.reshape(1, hp)
    kernel = functools.partial(_prep_kernel, t=float(t), h_real=float(h_real),
                               apply_ln=apply_ln)
    xp, tmax = pl.pallas_call(
        kernel,
        out_shape=(jax.ShapeDtypeStruct((n, hp), jnp.float32),
                   jax.ShapeDtypeStruct((nt * 8, hp), jnp.float32)),
        grid=(nt,),
        in_specs=[
            pl.BlockSpec((tn, hp), lambda i: (i, 0)),
            pl.BlockSpec((1, hp), lambda i: (0, 0)),
            pl.BlockSpec((1, hp), lambda i: (0, 0)),
            pl.BlockSpec((1, hp), lambda i: (0, 0)),
        ],
        out_specs=(pl.BlockSpec((tn, hp), lambda i: (i, 0)),
                   pl.BlockSpec((8, hp), lambda i: (i, 0))),
        compiler_params=_cparams((_par(),), vmem_limit),
    )(h, g, b, fmask)
    smax = jnp.max(tmax, axis=0, keepdims=True)   # global softmax shift
    return xp, smax


def _pack_kernel(xp_ref, smax_ref, o_ref, *, t):
    # exp computed ONCE per source node (not once per destination tile), and
    # the num/den operands packed side-by-side so the aggregation is a single
    # mask @ [e*msg | e] matmul.  Stored in bf16 for MXU rate / HBM savings.
    hp = xp_ref.shape[1]
    msg = jnp.maximum(xp_ref[...], 0.0) + _MSG_EPS
    e = jnp.exp(jnp.float32(t) * msg - smax_ref[...])
    o_ref[:, 0:hp] = (e * msg).astype(jnp.bfloat16)
    o_ref[:, hp:2 * hp] = e.astype(jnp.bfloat16)


def pack(xp, smax, *, t, tile_n=512, vmem_limit=None):
    n, hp = xp.shape
    tn = _pick_tile(n, tile_n, 8)
    kernel = functools.partial(_pack_kernel, t=float(t))
    return pl.pallas_call(
        kernel,
        out_shape=jax.ShapeDtypeStruct((n, 2 * hp), jnp.bfloat16),
        grid=(n // tn,),
        in_specs=[
            pl.BlockSpec((tn, hp), lambda i: (i, 0)),
            pl.BlockSpec((1, hp), lambda i: (0, 0)),
        ],
        out_specs=pl.BlockSpec((tn, 2 * hp), lambda i: (i, 0)),
        compiler_params=_cparams((_par(),), vmem_limit),
    )(xp, smax)


def _genconv_kernel(ksel_ref, cnt_ref, *refs, hp, has_res, resident, tk, nk):
    if has_res:
        packed_ref, mask_ref, xd_ref, res_ref, w_ref, b_ref, o_ref, acc_ref = refs
    else:
        packed_ref, mask_ref, xd_ref, w_ref, b_ref, o_ref, acc_ref = refs
        res_ref = None

    i = pl.program_id(0)
    k = pl.program_id(1)

    @pl.when(k == 0)
    def _():
        acc_ref[...] = jnp.zeros_like(acc_ref)

    # Only accumulate for non-empty adjacency tiles (k compacted by ksel);
    # trailing steps repeat the previous block index -> no re-DMA, no compute.
    @pl.when(k < cnt_ref[i])
    def _():
        if resident and nk > 1:
            src = pl.multiple_of(ksel_ref[i, k] * tk, 128)
            pk = packed_ref[pl.ds(src, tk), :]
        else:
            pk = packed_ref[...]
        # Single bf16 MXU matmul accumulating packed [num | den] in f32.
        # Exact under source (K) tiling because the softmax shift is global.
        acc_ref[...] += jnp.dot(mask_ref[...], pk,
                                preferred_element_type=jnp.float32)

    @pl.when(k == pl.num_programs(1) - 1)
    def _():
        acc = acc_ref[...]
        num = acc[:, :hp]
        den = acc[:, hp:]
        m = num / jnp.maximum(den, _MSG_EPS)          # softmax aggregation
        upd = xd_ref[...] + m                         # x + aggregated msg
        out = (jnp.dot(upd.astype(jnp.bfloat16), w_ref[...],
                       preferred_element_type=jnp.float32)
               + b_ref[...])                          # GENConv MLP (bf16 MXU)
        if has_res:
            out = out + res_ref[...]                  # 'res+' skip connection
        o_ref[...] = out


def genconv(packed, mask, xd, res, w, b, ksel, cnt, *, td, tk,
            resident, vmem_limit):
    n_pad, hp2 = packed.shape
    hp = hp2 // 2
    nd = mask.shape[0]
    nD, nK = nd // td, n_pad // tk
    has_res = res is not None

    kernel = functools.partial(_genconv_kernel, hp=hp, has_res=has_res,
                               resident=resident, tk=tk, nk=nK)

    if resident:
        # Packed slab DMA'd once per kernel (constant block index), sliced
        # per source tile inside the kernel.
        packed_spec = pl.BlockSpec((n_pad, hp2), lambda i, k, ks, ct: (0, 0))
    else:
        # Packed slab streamed per (non-empty, compacted) source tile.
        packed_spec = pl.BlockSpec((tk, hp2),
                                   lambda i, k, ks, ct: (ks[i, k], 0))

    in_specs = [
        packed_spec,                                           # [e*msg | e]
        pl.BlockSpec((td, tk), lambda i, k, ks, ct: (i, ks[i, k])),  # bf16 adj
        pl.BlockSpec((td, hp), lambda i, k, ks, ct: (i, 0)),   # conv input
    ]
    args = [packed, mask, xd]
    if has_res:
        in_specs.append(pl.BlockSpec((td, hp), lambda i, k, ks, ct: (i, 0)))
        args.append(res)
    in_specs += [
        pl.BlockSpec((hp, hp), lambda i, k, ks, ct: (0, 0)),   # MLP weight bf16
        pl.BlockSpec((1, hp), lambda i, k, ks, ct: (0, 0)),    # MLP bias
    ]
    args += [w, b.reshape(1, hp)]

    return pl.pallas_call(
        kernel,
        out_shape=jax.ShapeDtypeStruct((nd, hp), jnp.float32),
        grid_spec=pltpu.PrefetchScalarGridSpec(
            num_scalar_prefetch=2,
            grid=(nD, nK),
            in_specs=in_specs,
            out_specs=pl.BlockSpec((td, hp), lambda i, k, ks, ct: (i, 0)),
            scratch_shapes=[pltpu.VMEM((td, hp2), jnp.float32)]),
        compiler_params=_cparams((_par(), "arbitrary"), vmem_limit),
    )(ksel, cnt, *args)


def _ln_relu_kernel(x_ref, g_ref, b_ref, fm_ref, o_ref, *, h_real):
    o_ref[...] = _masked_ln_relu(x_ref[...], g_ref[...], b_ref[...],
                                 fm_ref[...], h_real, _LN_EPS)


def ln_relu(x, g, b, fmask, *, h_real, tile_n=512, vmem_limit=None):
    n, hp = x.shape
    tn = _pick_tile(n, tile_n, 8)
    g = g.reshape(1, hp)
    b = b.reshape(1, hp)
    fmask = fmask.reshape(1, hp)
    kernel = functools.partial(_ln_relu_kernel, h_real=float(h_real))
    return pl.pallas_call(
        kernel,
        out_shape=jax.ShapeDtypeStruct((n, hp), jnp.float32),
        grid=(n // tn,),
        in_specs=[
            pl.BlockSpec((tn, hp), lambda i: (i, 0)),
            pl.BlockSpec((1, hp), lambda i: (0, 0)),
            pl.BlockSpec((1, hp), lambda i: (0, 0)),
            pl.BlockSpec((1, hp), lambda i: (0, 0)),
        ],
        out_specs=pl.BlockSpec((tn, hp), lambda i: (i, 0)),
        compiler_params=_cparams((_par(),), vmem_limit),
    )(x, g, b, fmask)


def _pred_logsoftmax_kernel(x_ref, w_ref, b_ref, o_ref):
    # Classes are padded to a lane-dense width; padded columns carry zero
    # weights and a -1e30 bias so they vanish under exp and the log_softmax
    # over the real classes is exact.  Padded columns are sliced off outside.
    z = (jnp.dot(x_ref[...], w_ref[...], preferred_element_type=jnp.float32)
         + b_ref[...])
    z = z - jnp.max(z, axis=-1, keepdims=True)
    o_ref[...] = z - jnp.log(jnp.sum(jnp.exp(z), axis=-1, keepdims=True))


def pred_logsoftmax(x, w, b, *, tile_n=256, vmem_limit=None):
    n, hp = x.shape
    c = w.shape[1]
    tn = _pick_tile(n, tile_n, 8)
    return pl.pallas_call(
        _pred_logsoftmax_kernel,
        out_shape=jax.ShapeDtypeStruct((n, c), jnp.float32),
        grid=(n // tn,),
        in_specs=[
            pl.BlockSpec((tn, hp), lambda i: (i, 0)),
            pl.BlockSpec((hp, c), lambda i: (0, 0)),
            pl.BlockSpec((1, c), lambda i: (0, 0)),
        ],
        out_specs=pl.BlockSpec((tn, c), lambda i: (i, 0)),
        compiler_params=_cparams((_par(),), vmem_limit),
    )(x, w, b.reshape(1, c))


# ----------------------------- forward (glue) ------------------------------

def deepergcn_forward(x, mask, params, *, num_layers, n_out, t=1.0,
                      tile_d=512, tile_k=512, max_resident_packed_bytes=None):
    """DeeperGCN.forward for block='res+', conv='gen', training=False."""
    n, in_feats = x.shape
    assert n_out <= n
    hidden = params["gcn_w"][0].shape[0]
    n_classes = params["pred_w"].shape[1]
    hp = _round_up(hidden, _LANE)
    cp = _round_up(n_classes, _LANE)
    budget = _vmem_budget_bytes()

    # --- node padding: keeps every pass pipelined with aligned tiles; zero
    # mask rows/cols and the global softmax-shift invariance keep it exact ---
    n_pad = n if n <= _FULL_BLOCK_MAX else _round_up(n, _LANE)
    if n_pad != n:
        x = jnp.pad(x, ((0, n_pad - n), (0, 0)))
        mask = jnp.pad(mask, ((0, n_pad - n), (0, n_pad - n)))

    # --- parameter padding to lane-dense widths ---
    enc_w = _pad2(params["enc_w"], in_feats, hp)
    enc_b = _pad1(params["enc_b"], hp)
    pred_w = _pad2(params["pred_w"], hp, cp)
    pred_b = jnp.concatenate(
        [params["pred_b"],
         jnp.full((cp - n_classes,), -1e30, jnp.float32)])
    gcn_w = [_pad2(w, hp, hp).astype(jnp.bfloat16) for w in params["gcn_w"]]
    gcn_b = [_pad1(b, hp) for b in params["gcn_b"]]
    ln_g = [_pad1(g, hp) for g in params["ln_g"]]
    ln_b = [_pad1(b, hp) for b in params["ln_b"]]
    fmask = (jnp.arange(hp) < hidden).astype(jnp.float32).reshape(1, hp)

    # --- genconv tiling + adjacency tile-occupancy (empty-tile skipping) ---
    td = _pick_tile(n_pad, tile_d, 8)
    tk = _pick_tile(n_pad, tile_k, _LANE)
    nD, nK = n_pad // td, n_pad // tk
    occ = (mask != 0).reshape(nD, td, nK, tk).any(axis=(1, 3))
    cnt = jnp.sum(occ, axis=1).astype(jnp.int32)
    order = jnp.argsort(jnp.logical_not(occ).astype(jnp.int32),
                        axis=1).astype(jnp.int32)        # non-empty first
    fill = jnp.take_along_axis(order, jnp.maximum(cnt - 1, 0)[:, None], axis=1)
    kidx = jnp.arange(nK, dtype=jnp.int32)[None, :]
    ksel = jnp.where(kidx < cnt[:, None], order, fill).astype(jnp.int32)

    # 0/1 adjacency is exact in bf16 -> half the N^2 HBM traffic + bf16 MXU.
    mask_bf16 = mask.astype(jnp.bfloat16)

    # Make the packed [e*msg | e] slab fully VMEM-resident when it fits the
    # per-generation budget (avoids re-streaming it once per dst tile).
    packed_bytes = n_pad * 2 * hp * 2
    cap = budget // 2 if max_resident_packed_bytes is None \
        else max_resident_packed_bytes
    resident = 2 * packed_bytes <= cap

    h = linear(x, enc_w, enc_b, vmem_limit=budget)     # node_features_encoder

    # layer 0: GENConv with no preceding LN and no residual.
    xp, smax = prep(h, ln_g[0], ln_b[0], fmask, t=t, h_real=hidden,
                    apply_ln=False, vmem_limit=budget)
    packed = pack(xp, smax, t=t, vmem_limit=budget)
    h = genconv(packed, mask_bf16, xp, None, gcn_w[0], gcn_b[0],
                ksel, cnt, td=td, tk=tk, resident=resident, vmem_limit=budget)

    actv_sizes = []
    for layer in range(1, num_layers):
        # LN -> ReLU -> dropout(eval)=id fused into the msg prep pass.
        xp, smax = prep(h, ln_g[layer - 1], ln_b[layer - 1], fmask, t=t,
                        h_real=hidden, apply_ln=True, vmem_limit=budget)
        packed = pack(xp, smax, t=t, vmem_limit=budget)
        h = genconv(packed, mask_bf16, xp, h, gcn_w[layer], gcn_b[layer],
                    ksel, cnt, td=td, tk=tk, resident=resident,
                    vmem_limit=budget)
        actv_sizes.append(n * hidden)                  # h.numel() (unpadded)
        # TODO(synk): real DGL NodeFlow remapping (nf_move_layer_to); the
        # synthetic NodeFlow uses identity layer->layer maps, so no gather.

    # Seed-node slice first (rows independent -> exact), then final LN/ReLU,
    # prediction head and log_softmax on only the n_out seed rows.
    h_seed = h[:n_out]
    h_seed = ln_relu(h_seed, ln_g[num_layers - 1], ln_b[num_layers - 1],
                     fmask, h_real=hidden, vmem_limit=budget)
    out = pred_logsoftmax(h_seed, pred_w, pred_b,
                          vmem_limit=budget)[:, :n_classes]

    # size bookkeeping (torch.no_grad block): plain Python ints.
    layer_sizes = [n] * num_layers + [n_out]
    old_comb = old_actv = total_comb = total_actv = 0
    for blkid in range(1, num_layers):
        cur_comb = layer_sizes[blkid + 1] * hidden
        total_comb += old_comb
        old_comb += cur_comb
        total_actv += old_actv
        old_actv += actv_sizes[blkid - 1]
    return out, total_comb, total_actv


# ----------------------------- pure-JAX reference --------------------------

def ref_forward(x, mask, params, *, num_layers, n_out, t=1.0, bf16=True):
    def cast(a):
        return a.astype(jnp.bfloat16).astype(jnp.float32) if bf16 else a

    def lin(a, w, b):
        return a @ w + b

    def gen(hin, res, w, b):
        msg = jnp.maximum(hin, 0.0) + _MSG_EPS
        s = t * msg
        e = jnp.exp(s - jnp.max(s, axis=0, keepdims=True))
        mk = cast(mask)
        num = mk @ cast(e * msg)
        den = mk @ cast(e)
        m = num / jnp.maximum(den, _MSG_EPS)
        out = cast(hin + m) @ cast(w) + b
        return out if res is None else out + res

    def ln(a, g, b):
        mu = a.mean(-1, keepdims=True)
        v = ((a - mu) ** 2).mean(-1, keepdims=True)
        return (a - mu) * jax.lax.rsqrt(v + _LN_EPS) * g + b

    h = lin(x, params["enc_w"], params["enc_b"])
    h = gen(h, None, params["gcn_w"][0], params["gcn_b"][0])
    for l in range(1, num_layers):
        h2 = jnp.maximum(ln(h, params["ln_g"][l - 1], params["ln_b"][l - 1]),
                         0.0)
        h = gen(h2, h, params["gcn_w"][l], params["gcn_b"][l])
    h = jnp.maximum(ln(h, params["ln_g"][num_layers - 1],
                       params["ln_b"][num_layers - 1]), 0.0)
    h = lin(h, params["pred_w"], params["pred_b"])[:n_out]
    return jax.nn.log_softmax(h, axis=-1)


# ----------------------------------- main -----------------------------------

def _run_case(name, key, *, n, in_feats, hidden, n_classes, num_layers, n_out,
              t, edge_block=None, force_tiled_packed=False):
    keys = jax.random.split(key, 6)
    x = jax.random.normal(keys[0], (n, in_feats), jnp.float32)

    # Synthetic NodeFlow block edges as a dense adjacency mask:
    # mask[i, j] = 1.0 if there is an edge src j -> dst i.  Self loops ensure
    # every destination has at least one in-neighbour (softmax well-defined).
    adj = (jax.random.uniform(keys[1], (n, n)) < 0.10).astype(jnp.float32)
    if edge_block is not None:        # block-structured sparsity -> empty tiles
        blk = jnp.arange(n) // edge_block
        adj = adj * (blk[:, None] == blk[None, :]).astype(jnp.float32)
    mask = jnp.maximum(adj, jnp.eye(n, dtype=jnp.float32))

    def init_linear(k, fin, fout):
        kw, kb = jax.random.split(k)
        s = 1.0 / (fin ** 0.5)
        w = jax.random.uniform(kw, (fin, fout), jnp.float32, -s, s)
        b = jax.random.uniform(kb, (fout,), jnp.float32, -s, s)
        return w, b

    enc_w, enc_b = init_linear(keys[2], in_feats, hidden)
    pred_w, pred_b = init_linear(keys[3], hidden, n_classes)
    gk = jax.random.split(keys[4], num_layers)
    gcn_w, gcn_b, ln_g, ln_b = [], [], [], []
    for l in range(num_layers):
        w, b = init_linear(gk[l], hidden, hidden)   # GENConv MLP (mlp_layers=1)
        gcn_w.append(w)
        gcn_b.append(b)
        ln_g.append(jnp.ones((hidden,), jnp.float32))
        ln_b.append(jnp.zeros((hidden,), jnp.float32))
    params = dict(enc_w=enc_w, enc_b=enc_b, pred_w=pred_w, pred_b=pred_b,
                  gcn_w=gcn_w, gcn_b=gcn_b, ln_g=ln_g, ln_b=ln_b)

    out, comb_size, actv_size = deepergcn_forward(
        x, mask, params, num_layers=num_layers, n_out=n_out, t=t,
        max_resident_packed_bytes=(0 if force_tiled_packed else None))
    out = jax.block_until_ready(out)
    assert out.shape == (n_out, n_classes), (name, out.shape)
    assert bool(jnp.all(jnp.isfinite(out))), f"{name}: non-finite output"
    assert isinstance(comb_size, int) and isinstance(actv_size, int)

    # Reference matching the kernel math (bf16-rounded aggregation + MLP).
    ref_m = ref_forward(x, mask, params, num_layers=num_layers, n_out=n_out,
                        t=t, bf16=True)
    assert jnp.allclose(out, ref_m, atol=3e-2, rtol=3e-2), \
        f"{name}: mismatch vs bf16-matched reference"

    # Loose check against full-f32 module semantics.
    ref_f = ref_forward(x, mask, params, num_layers=num_layers, n_out=n_out,
                        t=t, bf16=False)
    assert jnp.allclose(out, ref_f, atol=1.5e-1, rtol=1.5e-1), \
        f"{name}: mismatch vs f32 reference"


if __name__ == "__main__":
    key = jax.random.PRNGKey(0)
    k1, k2 = jax.random.split(key)

    # Toy config (args.n_layers=2 -> num_layers=3); single-tile grids,
    # VMEM-resident packed slab.
    _run_case("toy", k1, n=64, in_feats=16, hidden=32, n_classes=8,
              num_layers=3, n_out=16, t=1.0)

    # Larger block-sparse graph: node padding (600 -> 640), multi-tile
    # (dst,src) grid, empty adjacency tiles skipped via scalar prefetch,
    # resident packed slab with dynamic source slicing.
    _run_case("blocksparse", k2, n=600, in_feats=24, hidden=48, n_classes=5,
              num_layers=3, n_out=37, t=1.0, edge_block=128)

    # Same graph with the packed slab streamed per source tile
    # (data-dependent BlockSpec index_map path).
    _run_case("blocksparse_tiled", k2, n=600, in_feats=24, hidden=48,
              n_classes=5, num_layers=3, n_out=37, t=1.0, edge_block=128,
              force_tiled_packed=True)

    print("KERNEL_OK")
</pallas_src>

<mosaic_0001>
module attributes {stable_mosaic.version = 11 : i64} {
  func.func @_linear_kernel(%arg0: i32, %arg1: memref<64x16xf32, #tpu.memory_space<vmem>>, %arg2: memref<16x128xf32, #tpu.memory_space<vmem>>, %arg3: memref<1x128xf32, #tpu.memory_space<vmem>>, %arg4: memref<64x128xf32, #tpu.memory_space<vmem>>) attributes {dimension_semantics = [#tpu.dimension_semantics<parallel>], iteration_bounds = array<i64: 1>, scalar_prefetch = 0 : i64, scratch_operands = 0 : i64, tpu.core_type = #tpu.core_type<tc>, window_params = [{transform_indices = @transform_0, window_bounds = array<i64: 64, 16>}, {pipeline_mode = #tpu.pipeline_mode<synchronous>, transform_indices = @transform_1, window_bounds = array<i64: 16, 128>}, {pipeline_mode = #tpu.pipeline_mode<synchronous>, transform_indices = @transform_2, window_bounds = array<i64: 1, 128>}, {transform_indices = @transform_3, window_bounds = array<i64: 64, 128>}]} {
    %c0 = arith.constant 0 : index
    %c0_0 = arith.constant 0 : index
    %0 = vector.load %arg1[%c0, %c0_0] : memref<64x16xf32, #tpu.memory_space<vmem>>, vector<64x16xf32>
    %c0_1 = arith.constant 0 : index
    %c0_2 = arith.constant 0 : index
    %1 = vector.load %arg2[%c0_1, %c0_2] : memref<16x128xf32, #tpu.memory_space<vmem>>, vector<16x128xf32>
    %cst = arith.constant dense<0.000000e+00> : vector<64x128xf32>
    %2 = tpu.matmul %0, %1, %cst {dimension_numbers = #tpu.dot_dimension_numbers<[1], [0], [0], [1], [0, 0, 1, 1], [], []>} : vector<64x16xf32>, vector<16x128xf32>, vector<64x128xf32> -> vector<64x128xf32>
    %c0_3 = arith.constant 0 : index
    %c0_4 = arith.constant 0 : index
    %3 = vector.load %arg3[%c0_3, %c0_4] : memref<1x128xf32, #tpu.memory_space<vmem>>, vector<1x128xf32>
    %4 = vector.broadcast %3 : vector<1x128xf32> to vector<64x128xf32>
    %5 = arith.addf %2, %4 : vector<64x128xf32>
    %c0_5 = arith.constant 0 : index
    %c0_6 = arith.constant 0 : index
    %6 = vector.load %arg4[%c0_5, %c0_6] : memref<64x128xf32, #tpu.memory_space<vmem>>, vector<64x128xf32>
    tpu.vector_store %arg4[%c0_5, %c0_6], %5 {strides = array<i32>} : memref<64x128xf32, #tpu.memory_space<vmem>>, vector<64x128xf32>,
    return
  }
  func.func @transform_0(%arg0: i32) -> (i32, i32) {
    %c0_i32 = arith.constant 0 : i32
    %c0_i32_0 = arith.constant 0 : i32
    return %arg0, %c0_i32 : i32, i32
  }
  func.func @transform_1(%arg0: i32) -> (i32, i32) {
    %c0_i32 = arith.constant 0 : i32
    %c0_i32_0 = arith.constant 0 : i32
    %c0_i32_1 = arith.constant 0 : i32
    return %c0_i32, %c0_i32_0 : i32, i32
  }
  func.func @transform_2(%arg0: i32) -> (i32, i32) {
    %c0_i32 = arith.constant 0 : i32
    %c0_i32_0 = arith.constant 0 : i32
    %c0_i32_1 = arith.constant 0 : i32
    return %c0_i32, %c0_i32_0 : i32, i32
  }
  func.func @transform_3(%arg0: i32) -> (i32, i32) {
    %c0_i32 = arith.constant 0 : i32
    %c0_i32_0 = arith.constant 0 : i32
    return %arg0, %c0_i32 : i32, i32
  }
}

</mosaic_0001>

<llo_original>
// kernel: tpu_custom_call.1
$region0: #{tpu_custom_call.1}
  #allocation0 [shape = 'u32[]', space=smem, size = 0x4, offset = 0x4, fixed_abs, tag = 'smem constant byte address 0x4 - core index']
  #allocation1 [shape = 'u32[144,128]{1,0:T(1,128)}', space=vmem, size = 0x12000, scoped, tag = 'internal scratch']
  %s0 = inlined_call_operand.vmem [shape: f32[64,16], index: 0, kind: input, shape index: {}]
  %s1 = inlined_call_operand.vmem [shape: f32[16,128], index: 1, kind: input, shape index: {}]
  %s2 = inlined_call_operand.vmem [shape: f32[1,128], index: 2, kind: input, shape index: {}]
  %s3 = inlined_call_operand.hbm [shape: f32[64,128], index: 3, kind: output, shape index: {}]
  %s4 = sld [smem:[#allocation0]]
  $region22: #{tpu_custom_call.1} parent=0
    _
  %s6 = ssub.s32 1, %s4
  %s7 = scalar_select 0, %s6, %s4
  $region1: #{tpu_custom_call.1} parent=0
    #allocation2 [shape = 'u8[32768]{0}', space=vmem, size = 0x8000, scoped, tag = 'output window, operand 0, single buffered']
    #allocation3 [shape = 's32[1]{0}', space=sflag, size = 0x4, scoped, tag = 'scoped memory for tpu_custom_call.1']
    %8 = vsyncpa [#allocation3], 0
    // Predicated region
    $region2: #{tpu_custom_call.1} parent=1 // pred_check
      _
    $region3: #{tpu_custom_call.1} parent=1 // pred_check_branch
      %10 = sbr.rel (0) target = $region5
    $region4: #{tpu_custom_call.1} parent=1 // pred_region
      _
    $region5: #{tpu_custom_call.1} parent=1 // pred_fallthru
      _
    // Predicated region
    $region6: #{tpu_custom_call.1} parent=1 // pred_check
      _
    $region7: #{tpu_custom_call.1} parent=1 // pred_check_branch
      %12 = sbr.rel (0) target = $region9
    $region8: #{tpu_custom_call.1} parent=1 // pred_region
      _
    $region9: #{tpu_custom_call.1} parent=1 // pred_fallthru
      _
    // Predicated region
    $region10: #{tpu_custom_call.1} parent=1 // pred_check
      _
    $region11: #{tpu_custom_call.1} parent=1 // pred_check_branch
      %14 = sbr.rel (0) target = $region13
    $region12: #{tpu_custom_call.1} parent=1 // pred_region
      _
    $region13: #{tpu_custom_call.1} parent=1 // pred_fallthru
      _
    %v15 = vld [vmem:[%s0] sm:$0xff]
    %v16 = vld [vmem:[%s0 + $0x8] sm:$0xff]
    %v17 = vld [vmem:[%s0 + $0x10] sm:$0xff]
    %v18 = vld [vmem:[%s0 + $0x18] sm:$0xff]
    %v19 = vld [vmem:[%s0 + $0x20] sm:$0xff]
    %v20 = vld [vmem:[%s0 + $0x28] sm:$0xff]
    %v21 = vld [vmem:[%s0 + $0x30] sm:$0xff]
    %v22 = vld [vmem:[%s0 + $0x38] sm:$0xff]
    %v23 = vld [vmem:[%s1] sm:$0xff]
    %v24 = vld [vmem:[%s1 + $0x8] sm:$0xff]
    %v25 = vld [vmem:[%s2] sm:$0x1]
    %v27 = vlaneseq
    %v28 = vshrl.u32 %v27, 7
    %v29 = vsub.s32 0, %v28
    %v30 = vrot.slane %v25, %v29
    %vm32 = vcmask 130048
    %v34 = vsel %vm32, %v15, 0
    %v37 = vsel %vm32, %v16, 0
    %v40 = vsel %vm32, %v17, 0
    %v43 = vsel %vm32, %v18, 0
    %v46 = vsel %vm32, %v19, 0
    %v49 = vsel %vm32, %v20, 0
    %v52 = vsel %vm32, %v21, 0
    %v55 = vsel %vm32, %v22, 0
    %57 = vmatprep.subr.mxu0 0.0
    %58 = vmatpush1.msra.mxu0 %v23
    %59 = vmatprep.subr.mxu0 0.0
    %60 = vmatpush1.msra.mxu0 %v24
    %61 = vmatprep.subr.mxu0 0.0
    %62 = vmatpush1.msra.mxu0 0.0
    %63 = vmatprep.subr.mxu0 0.0
    %64 = vmatpush1.msra.mxu0 0.0
    %65 = vmatprep.subr.mxu0 0.0
    %66 = vmatpush1.msra.mxu0 0.0
    %67 = vmatprep.subr.mxu0 0.0
    %68 = vmatpush1.msra.mxu0 0.0
    %69 = vmatprep.subr.mxu0 0.0
    %70 = vmatpush1.msra.mxu0 0.0
    %71 = vmatprep.subr.mxu0 0.0
    %72 = vmatpush1.msra.mxu0 0.0
    %73 = vmatprep.subr.mxu0 0.0
    %74 = vmatpush1.msra.mxu0 0.0
    %75 = vmatprep.subr.mxu0 0.0
    %76 = vmatpush1.msra.mxu0 0.0
    %77 = vmatprep.subr.mxu0 0.0
    %78 = vmatpush1.msra.mxu0 0.0
    %79 = vmatprep.subr.mxu0 0.0
    %80 = vmatpush1.msra.mxu0 0.0
    %81 = vmatprep.subr.mxu0 0.0
    %82 = vmatpush1.msra.mxu0 0.0
    %83 = vmatprep.subr.mxu0 0.0
    %84 = vmatpush1.msra.mxu0 0.0
    %85 = vmatprep.subr.mxu0 0.0
    %86 = vmatpush1.msra.mxu0 0.0
    %87 = vmatprep.subr.mxu0 0.0
    %88 = vmatpush1.msra.mxu0 0.0
    %89 = vmatprep.subr.mxu0 0.0
    %90 = vmatpush1.msra.mxu0 0.0
    %91 = vmatprep.subr.mxu0 0.0
    %92 = vmatpush1.msra.mxu0 0.0
    %93 = vmatprep.subr.mxu0 0.0
    %94 = vmatpush1.msra.mxu0 0.0
    %95 = vmatprep.subr.mxu0 0.0
    %96 = vmatpush1.msra.mxu0 0.0
    %97 = vmatprep.subr.mxu0 0.0
    %98 = vmatpush1.msra.mxu0 0.0
    %99 = vmatprep.subr.mxu0 0.0
    %100 = vmatpush1.msra.mxu0 0.0
    %101 = vmatprep.subr.mxu0 0.0
    %102 = vmatpush1.msra.mxu0 0.0
    %103 = vmatprep.subr.mxu0 0.0
    %104 = vmatpush1.msra.mxu0 0.0
    %105 = vmatprep.subr.mxu0 0.0
    %106 = vmatpush1.msra.mxu0 0.0
    %107 = vmatprep.subr.mxu0 0.0
    %108 = vmatpush1.msra.mxu0 0.0
    %109 = vmatprep.subr.mxu0 0.0
    %110 = vmatpush1.msra.mxu0 0.0
    %111 = vmatprep.subr.mxu0 0.0
    %112 = vmatpush1.msra.mxu0 0.0
    %113 = vmatprep.subr.mxu0 0.0
    %114 = vmatpush1.msra.mxu0 0.0
    %115 = vmatprep.subr.mxu0 0.0
    %116 = vmatpush1.msra.mxu0 0.0
    %117 = vmatprep.subr.mxu0 0.0
    %118 = vmatpush1.msra.mxu0 0.0
    %119 = vmatprep.subr.mxu0 0.0
    %120 = vmatpush1.msra.mxu0 0.0
    %121 = vmatprep.mubr.f32.mxu0 0.0
    %122 = vmatmul.mubr.f32.gmra.mrb[0].mxu0 %v34
    %v123 = vpop.f32.mrb[0].mxu0
    %v124 = vadd.f32 %v30, %v123
    %v125 = vpop.f32.mrb[0].mxu0
    %126 = vmatprep.mubr.f32.mxu0 0.0
    %127 = vmatmul.mubr.f32.gmra.mrb[0].mxu0 %v37
    %v128 = vpop.f32.mrb[0].mxu0
    %v129 = vadd.f32 %v30, %v128
    %v130 = vpop.f32.mrb[0].mxu0
    %131 = vmatprep.mubr.f32.mxu0 0.0
    %132 = vmatmul.mubr.f32.gmra.mrb[0].mxu0 %v40
    %v133 = vpop.f32.mrb[0].mxu0
    %v134 = vadd.f32 %v30, %v133
    %v135 = vpop.f32.mrb[0].mxu0
    %136 = vmatprep.mubr.f32.mxu0 0.0
    %137 = vmatmul.mubr.f32.gmra.mrb[0].mxu0 %v43
    %v138 = vpop.f32.mrb[0].mxu0
    %v139 = vadd.f32 %v30, %v138
    %v140 = vpop.f32.mrb[0].mxu0
    %141 = vmatprep.mubr.f32.mxu0 0.0
    %142 = vmatmul.mubr.f32.gmra.mrb[0].mxu0 %v46
    %v143 = vpop.f32.mrb[0].mxu0
    %v144 = vadd.f32 %v30, %v143
    %v145 = vpop.f32.mrb[0].mxu0
    %146 = vmatprep.mubr.f32.mxu0 0.0
    %147 = vmatmul.mubr.f32.gmra.mrb[0].mxu0 %v49
    %v148 = vpop.f32.mrb[0].mxu0
    %v149 = vadd.f32 %v30, %v148
    %v150 = vpop.f32.mrb[0].mxu0
    %151 = vmatprep.mubr.f32.mxu0 0.0
    %152 = vmatmul.mubr.f32.gmra.mrb[0].mxu0 %v52
    %v153 = vpop.f32.mrb[0].mxu0
    %v154 = vadd.f32 %v30, %v153
    %v155 = vpop.f32.mrb[0].mxu0
    %156 = vmatprep.mubr.f32.mxu0 0.0
    %157 = vmatmul.mubr.f32.gmra.mrb[0].mxu0 %v55
    %v158 = vpop.f32.mrb[0].mxu0
    %v159 = vadd.f32 %v30, %v158
    %v160 = vpop.f32.mrb[0].mxu0
    %161 = vdwg.mxu0
    %162 = vst [vmem:[#allocation2] sm:$0xff] %v124
    %163 = vst [vmem:[#allocation2 + $0x8] sm:$0xff] %v129
    %164 = vst [vmem:[#allocation2 + $0x10] sm:$0xff] %v134
    %165 = vst [vmem:[#allocation2 + $0x18] sm:$0xff] %v139
    %166 = vst [vmem:[#allocation2 + $0x20] sm:$0xff] %v144
    %167 = vst [vmem:[#allocation2 + $0x28] sm:$0xff] %v149
    %168 = vst [vmem:[#allocation2 + $0x30] sm:$0xff] %v154
    %169 = vst [vmem:[#allocation2 + $0x38] sm:$0xff] %v159
    // Predicated region
    $region14: #{tpu_custom_call.1} parent=1 // pred_check
      _
    $region15: #{tpu_custom_call.1} parent=1 // pred_check_branch
      %171 = sbr.rel (0) target = $region17
    $region16: #{tpu_custom_call.1} parent=1 // pred_region
      %s173 = ssub.s32 1024, 1024
      %174 = vsyncadd [#allocation3], %s173
      %s175 = sshll.u32 [#allocation2], 4
      %s176 = int_to_ptr.vmem [resolvable:$true] %s175
      %181 = dma.vmem_to_hbm [thread:$0]  %s176, 1024, %s3, [#allocation3], 128, 128, 8
    $region17: #{tpu_custom_call.1} parent=1 // pred_fallthru
      _
    // Predicated region
    $region18: #{tpu_custom_call.1} parent=1 // pred_check
      _
    $region19: #{tpu_custom_call.1} parent=1 // pred_check_branch
      %183 = sbr.rel (0) target = $region21
    $region20: #{tpu_custom_call.1} parent=1 // pred_region
      %184 = dma.done [#allocation3], 1024
    $region21: #{tpu_custom_call.1} parent=1 // pred_fallthru
      _
    %185 = vsyncpa [#allocation3], 1

</llo_original>
